<compile_context>
chip_gen: v7x
topology: tpu7x:2x2x1
jax: 0.10.0
libtpu: 0.0.40
codegen_flags: <defaults>
</compile_context>

<pallas_src>
import jax
import jax.numpy as jnp
from jax.experimental import pallas as pl
from jax.experimental.pallas import tpu as pltpu


def _objwise_mlp_kernel(counts_ref, x_ref, m_ref, w1_ref, b1_ref, w2_ref, b2_ref, o_ref):
    # counts_ref: (num_tiles,) int32 in SMEM  (scalar prefetch: real rows per tile)
    # x_ref:  (tm, D)   row tile of flattened input (native dtype)
    # m_ref:  (tm, 1)   float mask (1.0 = real data, 0.0 = pad)
    # w1_ref: (D, Hp), b1_ref: (1, Hp)
    # w2_ref: (Hp, Op), b2_ref: (1, Op)
    # o_ref:  (tm, Op)  lane-dense output tile
    cnt = counts_ref[pl.program_id(0)]

    @pl.when(cnt > 0)
    def _compute():
        x = x_ref[...]  # no upcast: MXU takes native dtype, accumulates in f32
        h = jnp.dot(x, w1_ref[...], preferred_element_type=jnp.float32)
        h = jnp.maximum(h + b1_ref[...].astype(jnp.float32), 0.0)       # bias + ReLU in f32
        y = jnp.dot(h.astype(w2_ref.dtype), w2_ref[...],
                    preferred_element_type=jnp.float32)
        y = y + b2_ref[...].astype(jnp.float32)
        # select (not multiply): pad rows are forced to exact zeros even if the
        # padded input rows contain inf/NaN.
        y = jnp.where(m_ref[...] != 0.0, y, 0.0)
        o_ref[...] = y.astype(o_ref.dtype)

    @pl.when(cnt == 0)
    def _zero():
        # Tile contains only pad rows: ObjWise never computes them -> zeros.
        o_ref[...] = jnp.zeros_like(o_ref)


def _round_up(n, m):
    return ((n + m - 1) // m) * m


def objwise_mlp(x, data_mask, w1, b1, w2, b2, *, tm=256):
    """x: (B, S, D) ; data_mask: (B, S) bool -> (B, S, O)"""
    B, S, D = x.shape
    H = w1.shape[1]
    O = w2.shape[1]
    R = B * S

    # Lane-dense hidden / output widths (multiples of 128) -> unmasked stores.
    Hp = _round_up(H, 128)
    Op = _round_up(O, 128)

    # Row tile: multiple of 8 sublanes, never larger than the padded row count.
    tm = max(8, min(tm, _round_up(R, 8)))
    R_pad = _round_up(R, tm)
    num_tiles = R_pad // tm

    x_flat = x.reshape(R, D)
    m_flat = data_mask.reshape(R).astype(jnp.float32)
    if R_pad != R:
        x_flat = jnp.pad(x_flat, ((0, R_pad - R), (0, 0)))
        m_flat = jnp.pad(m_flat, (0, R_pad - R))
    m_col = m_flat.reshape(R_pad, 1)

    # Zero-pad weights/biases to lane-dense widths (padded cols/rows contribute 0).
    w1p = jnp.pad(w1, ((0, 0), (0, Hp - H)))
    b1p = jnp.pad(b1, (0, Hp - H)).reshape(1, Hp)
    w2p = jnp.pad(w2, ((0, Hp - H), (0, Op - O)))
    b2p = jnp.pad(b2, (0, Op - O)).reshape(1, Op)

    # Per-tile count of real rows (scalar prefetch) -> skip fully-padded tiles.
    tile_counts = m_flat.reshape(num_tiles, tm).sum(axis=1).astype(jnp.int32)

    itm = jnp.dtype(x.dtype).itemsize
    w_itm = jnp.dtype(w1.dtype).itemsize
    vmem_limit = int(
        2 * tm * (D + Op) * itm                       # double-buffered x / out tiles
        + 2 * (D * Hp + Hp + Hp * Op + Op) * w_itm    # resident weights + biases (2 bufs)
        + tm * (Hp + Op) * 4                          # in-kernel f32 intermediates
        + (8 << 20)                                   # headroom
    )
    vmem_limit = max(32 << 20, min(vmem_limit, 100 << 20))

    cost = pl.CostEstimate(
        flops=2 * R_pad * (D * Hp + Hp * Op),
        transcendentals=0,
        bytes_accessed=int(
            R_pad * D * itm + R_pad * Op * itm
            + (D * Hp + Hp + Hp * Op + Op) * w_itm
        ),
    )

    out_flat = pl.pallas_call(
        _objwise_mlp_kernel,
        out_shape=jax.ShapeDtypeStruct((R_pad, Op), x.dtype),
        grid_spec=pltpu.PrefetchScalarGridSpec(
            num_scalar_prefetch=1,
            grid=(num_tiles,),
            in_specs=[
                pl.BlockSpec((tm, D), lambda i, c: (i, 0)),    # x rows
                pl.BlockSpec((tm, 1), lambda i, c: (i, 0)),    # mask rows
                pl.BlockSpec((D, Hp), lambda i, c: (0, 0)),    # W1 (resident)
                pl.BlockSpec((1, Hp), lambda i, c: (0, 0)),    # b1
                pl.BlockSpec((Hp, Op), lambda i, c: (0, 0)),   # W2 (resident)
                pl.BlockSpec((1, Op), lambda i, c: (0, 0)),    # b2
            ],
            out_specs=pl.BlockSpec((tm, Op), lambda i, c: (i, 0)),
        ),
        compiler_params=pltpu.CompilerParams(
            dimension_semantics=("parallel",),
            vmem_limit_bytes=vmem_limit,
        ),
        cost_estimate=cost,
    )(tile_counts, x_flat, m_col, w1p, b1p, w2p, b2p)

    return out_flat[:R, :O].reshape(B, S, O)


def _reference(x, data_mask, w1, b1, w2, b2):
    # Pure-JAX reference of ObjWise semantics: compute on real rows only
    # (equivalently: compute all rows, zero out pads with a select).
    h = jnp.maximum(x.astype(jnp.float32) @ w1 + b1, 0.0)
    y = h @ w2 + b2
    y = jnp.where(data_mask[..., None], y, 0.0)
    return y.astype(x.dtype)


if __name__ == "__main__":
    key = jax.random.PRNGKey(0)
    kx, kw1, kb1, kw2, kb2 = jax.random.split(key, 5)

    B, S, D, H, O = 2, 8, 32, 64, 32

    x = jax.random.normal(kx, (B, S, D), dtype=jnp.float32)
    # deterministic ragged mask: first (S - b) positions of batch b are real data
    lengths = jnp.array([S - b for b in range(B)], dtype=jnp.int32)          # [8, 7]
    data_mask = (jnp.arange(S)[None, :] < lengths[:, None])                  # (B, S) bool

    # deterministic parameter init (synthetic; not a checkpoint load)
    w1 = jax.random.normal(kw1, (D, H), dtype=jnp.float32) * 0.1
    b1 = jax.random.normal(kb1, (H,), dtype=jnp.float32) * 0.01
    w2 = jax.random.normal(kw2, (H, O), dtype=jnp.float32) * 0.1
    b2 = jax.random.normal(kb2, (O,), dtype=jnp.float32) * 0.01

    out = objwise_mlp(x, data_mask, w1, b1, w2, b2)
    out = jax.block_until_ready(out)

    ref = _reference(x, data_mask, w1, b1, w2, b2)
    assert out.shape == (B, S, O)
    assert jnp.allclose(out, ref, atol=1e-4, rtol=1e-4)

    print("KERNEL_OK")
</pallas_src>

<mosaic_0001>
module attributes {stable_mosaic.version = 11 : i64} {
  func.func @_objwise_mlp_kernel(%arg0: i32, %arg1: memref<1xi32, #tpu.memory_space<smem>>, %arg2: memref<16x32xf32, #tpu.memory_space<vmem>>, %arg3: memref<16x1xf32, #tpu.memory_space<vmem>>, %arg4: memref<32x128xf32, #tpu.memory_space<vmem>>, %arg5: memref<1x128xf32, #tpu.memory_space<vmem>>, %arg6: memref<128x128xf32, #tpu.memory_space<vmem>>, %arg7: memref<1x128xf32, #tpu.memory_space<vmem>>, %arg8: memref<16x128xf32, #tpu.memory_space<vmem>>) attributes {dimension_semantics = [#tpu.dimension_semantics<parallel>], iteration_bounds = array<i64: 1>, scalar_prefetch = 1 : i64, scratch_operands = 0 : i64, tpu.core_type = #tpu.core_type<tc>, window_params = [{transform_indices = @transform_0, window_bounds = array<i64: 16, 32>}, {transform_indices = @transform_1, window_bounds = array<i64: 16, 1>}, {pipeline_mode = #tpu.pipeline_mode<synchronous>, transform_indices = @transform_2, window_bounds = array<i64: 32, 128>}, {pipeline_mode = #tpu.pipeline_mode<synchronous>, transform_indices = @transform_3, window_bounds = array<i64: 1, 128>}, {pipeline_mode = #tpu.pipeline_mode<synchronous>, transform_indices = @transform_4, window_bounds = array<i64: 128, 128>}, {pipeline_mode = #tpu.pipeline_mode<synchronous>, transform_indices = @transform_5, window_bounds = array<i64: 1, 128>}, {transform_indices = @transform_6, window_bounds = array<i64: 16, 128>}]} {
    %0 = arith.index_cast %arg0 : i32 to index
    %1 = memref.load %arg1[%0] : memref<1xi32, #tpu.memory_space<smem>>
    %c0_i32 = arith.constant 0 : i32
    %2 = arith.cmpi sgt, %1, %c0_i32 : i32
    %3 = arith.extui %2 : i1 to i32
    %c0_i32_0 = arith.constant 0 : i32
    %4 = arith.cmpi ne, %3, %c0_i32_0 : i32
    scf.if %4 {
      %c0 = arith.constant 0 : index
      %c0_3 = arith.constant 0 : index
      %8 = vector.load %arg2[%c0, %c0_3] : memref<16x32xf32, #tpu.memory_space<vmem>>, vector<16x32xf32>
      %c0_4 = arith.constant 0 : index
      %c0_5 = arith.constant 0 : index
      %9 = vector.load %arg4[%c0_4, %c0_5] : memref<32x128xf32, #tpu.memory_space<vmem>>, vector<32x128xf32>
      %cst = arith.constant dense<0.000000e+00> : vector<16x128xf32>
      %10 = tpu.matmul %8, %9, %cst {dimension_numbers = #tpu.dot_dimension_numbers<[1], [0], [0], [1], [0, 0, 1, 1], [], []>} : vector<16x32xf32>, vector<32x128xf32>, vector<16x128xf32> -> vector<16x128xf32>
      %c0_6 = arith.constant 0 : index
      %c0_7 = arith.constant 0 : index
      %11 = vector.load %arg5[%c0_6, %c0_7] : memref<1x128xf32, #tpu.memory_space<vmem>>, vector<1x128xf32>
      %12 = vector.broadcast %11 : vector<1x128xf32> to vector<16x128xf32>
      %13 = arith.addf %10, %12 : vector<16x128xf32>
      %cst_8 = arith.constant 0.000000e+00 : f32
      %14 = vector.broadcast %cst_8 : f32 to vector<16x128xf32>
      %15 = arith.maximumf %13, %14 : vector<16x128xf32>
      %c0_9 = arith.constant 0 : index
      %c0_10 = arith.constant 0 : index
      %16 = vector.load %arg6[%c0_9, %c0_10] : memref<128x128xf32, #tpu.memory_space<vmem>>, vector<128x128xf32>
      %cst_11 = arith.constant dense<0.000000e+00> : vector<16x128xf32>
      %17 = tpu.matmul %15, %16, %cst_11 {dimension_numbers = #tpu.dot_dimension_numbers<[1], [0], [0], [1], [0, 0, 1, 1], [], []>} : vector<16x128xf32>, vector<128x128xf32>, vector<16x128xf32> -> vector<16x128xf32>
      %c0_12 = arith.constant 0 : index
      %c0_13 = arith.constant 0 : index
      %18 = vector.load %arg7[%c0_12, %c0_13] : memref<1x128xf32, #tpu.memory_space<vmem>>, vector<1x128xf32>
      %19 = vector.broadcast %18 : vector<1x128xf32> to vector<16x128xf32>
      %20 = arith.addf %17, %19 : vector<16x128xf32>
      %c0_14 = arith.constant 0 : index
      %c0_15 = arith.constant 0 : index
      %21 = vector.load %arg3[%c0_14, %c0_15] : memref<16x1xf32, #tpu.memory_space<vmem>>, vector<16x1xf32>
      %cst_16 = arith.constant 0.000000e+00 : f32
      %22 = vector.broadcast %cst_16 : f32 to vector<16x1xf32>
      %23 = arith.cmpf one, %21, %22 : vector<16x1xf32>
      %cst_17 = arith.constant 0.000000e+00 : f32
      %24 = vector.shape_cast %23 : vector<16x1xi1> to vector<16x1xi1>
      %25 = vector.broadcast %24 : vector<16x1xi1> to vector<16x128xi1>
      %26 = vector.broadcast %cst_17 : f32 to vector<16x128xf32>
      %27 = arith.select %25, %20, %26 : vector<16x128xi1>, vector<16x128xf32>
      %c0_18 = arith.constant 0 : index
      %c0_19 = arith.constant 0 : index
      %28 = vector.load %arg8[%c0_18, %c0_19] : memref<16x128xf32, #tpu.memory_space<vmem>>, vector<16x128xf32>
      tpu.vector_store %arg8[%c0_18, %c0_19], %27 {strides = array<i32>} : memref<16x128xf32, #tpu.memory_space<vmem>>, vector<16x128xf32>,
    } else {
    }
    %c0_i32_1 = arith.constant 0 : i32
    %5 = arith.cmpi eq, %1, %c0_i32_1 : i32
    %6 = arith.extui %5 : i1 to i32
    %c0_i32_2 = arith.constant 0 : i32
    %7 = arith.cmpi ne, %6, %c0_i32_2 : i32
    scf.if %7 {
      %cst = arith.constant 0.000000e+00 : f32
      %8 = vector.broadcast %cst : f32 to vector<16x128xf32>
      %c0 = arith.constant 0 : index
      %c0_3 = arith.constant 0 : index
      %9 = vector.load %arg8[%c0, %c0_3] : memref<16x128xf32, #tpu.memory_space<vmem>>, vector<16x128xf32>
      tpu.vector_store %arg8[%c0, %c0_3], %8 {strides = array<i32>} : memref<16x128xf32, #tpu.memory_space<vmem>>, vector<16x128xf32>,
    } else {
    }
    return
  }
  func.func @transform_0(%arg0: i32, %arg1: memref<1xi32, #tpu.memory_space<smem>>) -> (i32, i32) {
    %c0_i32 = arith.constant 0 : i32
    %c0_i32_0 = arith.constant 0 : i32
    return %arg0, %c0_i32 : i32, i32
  }
  func.func @transform_1(%arg0: i32, %arg1: memref<1xi32, #tpu.memory_space<smem>>) -> (i32, i32) {
    %c0_i32 = arith.constant 0 : i32
    %c0_i32_0 = arith.constant 0 : i32
    return %arg0, %c0_i32 : i32, i32
  }
  func.func @transform_2(%arg0: i32, %arg1: memref<1xi32, #tpu.memory_space<smem>>) -> (i32, i32) {
    %c0_i32 = arith.constant 0 : i32
    %c0_i32_0 = arith.constant 0 : i32
    %c0_i32_1 = arith.constant 0 : i32
    return %c0_i32, %c0_i32_0 : i32, i32
  }
  func.func @transform_3(%arg0: i32, %arg1: memref<1xi32, #tpu.memory_space<smem>>) -> (i32, i32) {
    %c0_i32 = arith.constant 0 : i32
    %c0_i32_0 = arith.constant 0 : i32
    %c0_i32_1 = arith.constant 0 : i32
    return %c0_i32, %c0_i32_0 : i32, i32
  }
  func.func @transform_4(%arg0: i32, %arg1: memref<1xi32, #tpu.memory_space<smem>>) -> (i32, i32) {
    %c0_i32 = arith.constant 0 : i32
    %c0_i32_0 = arith.constant 0 : i32
    %c0_i32_1 = arith.constant 0 : i32
    return %c0_i32, %c0_i32_0 : i32, i32
  }
  func.func @transform_5(%arg0: i32, %arg1: memref<1xi32, #tpu.memory_space<smem>>) -> (i32, i32) {
    %c0_i32 = arith.constant 0 : i32
    %c0_i32_0 = arith.constant 0 : i32
    %c0_i32_1 = arith.constant 0 : i32
    return %c0_i32, %c0_i32_0 : i32, i32
  }
  func.func @transform_6(%arg0: i32, %arg1: memref<1xi32, #tpu.memory_space<smem>>) -> (i32, i32) {
    %c0_i32 = arith.constant 0 : i32
    %c0_i32_0 = arith.constant 0 : i32
    return %arg0, %c0_i32 : i32, i32
  }
}

</mosaic_0001>

<llo_original>
// kernel: tpu_custom_call.1
$region0: #{tpu_custom_call.1}
  #allocation0 [shape = 'u32[]', space=smem, size = 0x4, offset = 0x4, fixed_abs, tag = 'smem constant byte address 0x4 - core index']
  #allocation1 [shape = 'u32[144,128]{1,0:T(1,128)}', space=vmem, size = 0x12000, scoped, tag = 'internal scratch']
  #allocation2 [shape = 's32[1]{0}', space=sflag, size = 0x4, scoped, tag = 'scoped memory for tpu_custom_call.1']
  #allocation3 [shape = 's32[1]{0:T(128)S(6)}', space=smem, size = 0x200, scoped, tag = 'prefetched SMEM operand 0']
  %s0 = inlined_call_operand.<no memory space> [shape: s32[1], index: 0, kind: input, shape index: {}]
  %s1 = inlined_call_operand.vmem [shape: f32[16,32], index: 1, kind: input, shape index: {}]
  %s2 = inlined_call_operand.vmem [shape: f32[16,1], index: 2, kind: input, shape index: {}]
  %s3 = inlined_call_operand.hbm [shape: f32[32,128], index: 3, kind: input, shape index: {}]
  %s4 = inlined_call_operand.vmem [shape: f32[1,128], index: 4, kind: input, shape index: {}]
  %s5 = inlined_call_operand.hbm [shape: f32[128,128], index: 5, kind: input, shape index: {}]
  %s6 = inlined_call_operand.vmem [shape: f32[1,128], index: 6, kind: input, shape index: {}]
  %s7 = inlined_call_operand.hbm [shape: f32[16,128], index: 7, kind: output, shape index: {}]
  %s8 = sld [smem:[#allocation0]]
  $region50: #{tpu_custom_call.1} parent=0
    _
  %s10 = ssub.s32 1, %s8
  %s11 = scalar_select 0, %s10, %s8
  %12 = sst [smem:[#allocation3]] %s0
  $region1: #{tpu_custom_call.1} parent=0
    #allocation4 [shape = 'u8[16384]{0}', space=vmem, size = 0x4000, scoped, tag = 'input window, operand 3, single buffered']
    #allocation5 [shape = 's32[1]{0}', space=sflag, size = 0x4, scoped, tag = 'scoped memory for tpu_custom_call.1']
    #allocation6 [shape = 's32[1]{0}', space=sflag, size = 0x4, scoped, tag = 'scoped memory for tpu_custom_call.1']
    #allocation7 [shape = 'u8[65536]{0}', space=vmem, size = 0x10000, scoped, tag = 'input window, operand 5, single buffered']
    #allocation8 [shape = 's32[1]{0}', space=sflag, size = 0x4, scoped, tag = 'scoped memory for tpu_custom_call.1']
    #allocation9 [shape = 'u8[8192]{0}', space=vmem, size = 0x2000, scoped, tag = 'output window, operand 0, single buffered']
    %13 = vsyncpa [#allocation5], 0
    %14 = vsyncpa [#allocation8], 0
    %15 = vsyncpa [#allocation6], 0
    // Predicated region
    $region2: #{tpu_custom_call.1} parent=1 // pred_check
      _
    $region3: #{tpu_custom_call.1} parent=1 // pred_check_branch
      %17 = sbr.rel (0) target = $region5
    $region4: #{tpu_custom_call.1} parent=1 // pred_region
      _
    $region5: #{tpu_custom_call.1} parent=1 // pred_fallthru
      _
    // Predicated region
    $region6: #{tpu_custom_call.1} parent=1 // pred_check
      _
    $region7: #{tpu_custom_call.1} parent=1 // pred_check_branch
      %19 = sbr.rel (0) target = $region9
    $region8: #{tpu_custom_call.1} parent=1 // pred_region
      _
    $region9: #{tpu_custom_call.1} parent=1 // pred_fallthru
      _
    // Predicated region
    $region10: #{tpu_custom_call.1} parent=1 // pred_check
      _
    $region11: #{tpu_custom_call.1} parent=1 // pred_check_branch
      %21 = sbr.rel (0) target = $region13
    $region12: #{tpu_custom_call.1} parent=1 // pred_region
      %s23 = ssub.s32 512, 512
      %24 = vsyncadd [#allocation5], %s23
      %s25 = sshll.u32 [#allocation4], 4
      %s26 = int_to_ptr.vmem [resolvable:$true] %s25
      %31 = dma.hbm_to_vmem [thread:$0]  %s3, 512, %s26, [#allocation5], 128, 128, 8
    $region13: #{tpu_custom_call.1} parent=1 // pred_fallthru
      _
    // Predicated region
    $region14: #{tpu_custom_call.1} parent=1 // pred_check
      _
    $region15: #{tpu_custom_call.1} parent=1 // pred_check_branch
      %33 = sbr.rel (0) target = $region17
    $region16: #{tpu_custom_call.1} parent=1 // pred_region
      _
    $region17: #{tpu_custom_call.1} parent=1 // pred_fallthru
      _
    // Predicated region
    $region18: #{tpu_custom_call.1} parent=1 // pred_check
      _
    $region19: #{tpu_custom_call.1} parent=1 // pred_check_branch
      %35 = sbr.rel (0) target = $region21
    $region20: #{tpu_custom_call.1} parent=1 // pred_region
      %s37 = ssub.s32 2048, 2048
      %38 = vsyncadd [#allocation8], %s37
      %s39 = sshll.u32 [#allocation7], 4
      %s40 = int_to_ptr.vmem [resolvable:$true] %s39
      %45 = dma.hbm_to_vmem [thread:$0]  %s5, 2048, %s40, [#allocation8], 128, 128, 8
    $region21: #{tpu_custom_call.1} parent=1 // pred_fallthru
      _
    // Predicated region
    $region22: #{tpu_custom_call.1} parent=1 // pred_check
      _
    $region23: #{tpu_custom_call.1} parent=1 // pred_check_branch
      %47 = sbr.rel (0) target = $region25
    $region24: #{tpu_custom_call.1} parent=1 // pred_region
      _
    $region25: #{tpu_custom_call.1} parent=1 // pred_fallthru
      _
    // Predicated region
    $region26: #{tpu_custom_call.1} parent=1 // pred_check
      _
    $region27: #{tpu_custom_call.1} parent=1 // pred_check_branch
      %49 = sbr.rel (0) target = $region29
    $region28: #{tpu_custom_call.1} parent=1 // pred_region
      %50 = dma.done [#allocation5], 512
    $region29: #{tpu_custom_call.1} parent=1 // pred_fallthru
      _
    // Predicated region
    $region30: #{tpu_custom_call.1} parent=1 // pred_check
      _
    $region31: #{tpu_custom_call.1} parent=1 // pred_check_branch
      %52 = sbr.rel (0) target = $region33
    $region32: #{tpu_custom_call.1} parent=1 // pred_region
      %53 = dma.done [#allocation8], 2048
    $region33: #{tpu_custom_call.1} parent=1 // pred_fallthru
      _
    %s54 = sld [smem:[#allocation3]]
    %p55 = scmp.gt.s32.totalorder %s54, 0
    // Predicated region
    $region34: #{tpu_custom_call.1} parent=1 // pred_check
      %p56 = pneg %p55
    $region35: #{tpu_custom_call.1} parent=1 // pred_check_branch
      %58 = sbr.rel (%p56) target = $region37
    $region36: #{tpu_custom_call.1} parent=1 // pred_region
      %v59 = vld [vmem:[%s1] sm:$0xff]
      %v60 = vld [vmem:[%s1 + $0x8] sm:$0xff]
      %v61 = vld [vmem:[#allocation4] sm:$0xff]
      %v62 = vld [vmem:[#allocation4 + $0x8] sm:$0xff]
      %v63 = vld [vmem:[#allocation4 + $0x10] sm:$0xff]
      %v64 = vld [vmem:[#allocation4 + $0x18] sm:$0xff]
      %v65 = vld [vmem:[%s4] sm:$0x1]
      %v67 = vlaneseq
      %v68 = vshrl.u32 %v67, 7
      %v69 = vsub.s32 0, %v68
      %v70 = vrot.slane %v65, %v69
      %vm72 = vcmask 261120
      %v74 = vsel %vm72, %v59, 0
      %v77 = vsel %vm72, %v60, 0
      %79 = vmatprep.subr.mxu0 0.0
      %80 = vmatpush1.msra.mxu0 %v61
      %81 = vmatprep.subr.mxu0 0.0
      %82 = vmatpush1.msra.mxu0 %v62
      %83 = vmatprep.subr.mxu0 0.0
      %84 = vmatpush1.msra.mxu0 %v63
      %85 = vmatprep.subr.mxu0 0.0
      %86 = vmatpush1.msra.mxu0 %v64
      %87 = vmatprep.subr.mxu0 0.0
      %88 = vmatpush1.msra.mxu0 0.0
      %89 = vmatprep.subr.mxu0 0.0
      %90 = vmatpush1.msra.mxu0 0.0
      %91 = vmatprep.subr.mxu0 0.0
      %92 = vmatpush1.msra.mxu0 0.0
      %93 = vmatprep.subr.mxu0 0.0
      %94 = vmatpush1.msra.mxu0 0.0
      %95 = vmatprep.subr.mxu0 0.0
      %96 = vmatpush1.msra.mxu0 0.0
      %97 = vmatprep.subr.mxu0 0.0
      %98 = vmatpush1.msra.mxu0 0.0
      %99 = vmatprep.subr.mxu0 0.0
      %100 = vmatpush1.msra.mxu0 0.0
      %101 = vmatprep.subr.mxu0 0.0
      %102 = vmatpush1.msra.mxu0 0.0
      %103 = vmatprep.subr.mxu0 0.0
      %104 = vmatpush1.msra.mxu0 0.0
      %105 = vmatprep.subr.mxu0 0.0
      %106 = vmatpush1.msra.mxu0 0.0
      %107 = vmatprep.subr.mxu0 0.0
      %108 = vmatpush1.msra.mxu0 0.0
      %109 = vmatprep.subr.mxu0 0.0
      %110 = vmatpush1.msra.mxu0 0.0
      %111 = vmatprep.subr.mxu0 0.0
      %112 = vmatpush1.msra.mxu0 0.0
      %113 = vmatprep.subr.mxu0 0.0
      %114 = vmatpush1.msra.mxu0 0.0
      %115 = vmatprep.subr.mxu0 0.0
      %116 = vmatpush1.msra.mxu0 0.0
      %117 = vmatprep.subr.mxu0 0.0
      %118 = vmatpush1.msra.mxu0 0.0
      %119 = vmatprep.subr.mxu0 0.0
      %120 = vmatpush1.msra.mxu0 0.0
      %121 = vmatprep.subr.mxu0 0.0
      %122 = vmatpush1.msra.mxu0 0.0
      %123 = vmatprep.subr.mxu0 0.0
      %124 = vmatpush1.msra.mxu0 0.0
      %125 = vmatprep.subr.mxu0 0.0
      %126 = vmatpush1.msra.mxu0 0.0
      %127 = vmatprep.subr.mxu0 0.0
      %128 = vmatpush1.msra.mxu0 0.0
      %129 = vmatprep.subr.mxu0 0.0
      %130 = vmatpush1.msra.mxu0 0.0
      %131 = vmatprep.subr.mxu0 0.0
      %132 = vmatpush1.msra.mxu0 0.0
      %133 = vmatprep.subr.mxu0 0.0
      %134 = vmatpush1.msra.mxu0 0.0
      %135 = vmatprep.subr.mxu0 0.0
      %136 = vmatpush1.msra.mxu0 0.0
      %137 = vmatprep.subr.mxu0 0.0
      %138 = vmatpush1.msra.mxu0 0.0
      %139 = vmatprep.subr.mxu0 0.0
      %140 = vmatpush1.msra.mxu0 0.0
      %141 = vmatprep.subr.mxu0 0.0
      %142 = vmatpush1.msra.mxu0 0.0
      %143 = vmatprep.mubr.f32.mxu0 0.0
      %144 = vmatmul.mubr.f32.gmra.mrb[0].mxu0 %v74
      %v145 = vpop.f32.mrb[0].mxu0
      %v146 = vadd.f32 %v70, %v145
      %v147 = vpop.f32.mrb[0].mxu0
      %148 = vmatprep.mubr.f32.mxu0 0.0
      %149 = vmatmul.mubr.f32.gmra.mrb[0].mxu0 %v77
      %v150 = vpop.f32.mrb[0].mxu0
      %v151 = vadd.f32 %v70, %v150
      %v152 = vpop.f32.mrb[0].mxu0
      %153 = vdwg.mxu0
      %v154 = vmax.f32 %v146, 0.0
      %v155 = vmax.f32 %v151, 0.0
      %v156 = vld [vmem:[#allocation7] sm:$0xff]
      %v157 = vld [vmem:[#allocation7 + $0x8] sm:$0xff]
      %v158 = vld [vmem:[#allocation7 + $0x10] sm:$0xff]
      %v159 = vld [vmem:[#allocation7 + $0x18] sm:$0xff]
      %v160 = vld [vmem:[#allocation7 + $0x20] sm:$0xff]
      %v161 = vld [vmem:[#allocation7 + $0x28] sm:$0xff]
      %v162 = vld [vmem:[#allocation7 + $0x30] sm:$0xff]
      %v163 = vld [vmem:[#allocation7 + $0x38] sm:$0xff]
      %v164 = vld [vmem:[#allocation7 + $0x40] sm:$0xff]
      %v165 = vld [vmem:[#allocation7 + $0x48] sm:$0xff]
      %v166 = vld [vmem:[#allocation7 + $0x50] sm:$0xff]
      %v167 = vld [vmem:[#allocation7 + $0x58] sm:$0xff]
      %v168 = vld [vmem:[#allocation7 + $0x60] sm:$0xff]
      %v169 = vld [vmem:[#allocation7 + $0x68] sm:$0xff]
      %v170 = vld [vmem:[#allocation7 + $0x70] sm:$0xff]
      %v171 = vld [vmem:[#allocation7 + $0x78] sm:$0xff]
      %v172 = vld [vmem:[%s6] sm:$0x1]
      %v174 = vlaneseq
      %v175 = vshrl.u32 %v174, 7
      %v176 = vsub.s32 0, %v175
      %v177 = vrot.slane %v172, %v176
      %179 = vmatprep.subr.mxu0 0.0
      %180 = vmatpush1.msra.mxu0 %v156
      %181 = vmatprep.subr.mxu0 0.0
      %182 = vmatpush1.msra.mxu0 %v157
      %183 = vmatprep.subr.mxu0 0.0
      %184 = vmatpush1.msra.mxu0 %v158
      %185 = vmatprep.subr.mxu0 0.0
      %186 = vmatpush1.msra.mxu0 %v159
      %187 = vmatprep.subr.mxu0 0.0
      %188 = vmatpush1.msra.mxu0 %v160
      %189 = vmatprep.subr.mxu0 0.0
      %190 = vmatpush1.msra.mxu0 %v161
      %191 = vmatprep.subr.mxu0 0.0
      %192 = vmatpush1.msra.mxu0 %v162
      %193 = vmatprep.subr.mxu0 0.0
      %194 = vmatpush1.msra.mxu0 %v163
      %195 = vmatprep.subr.mxu0 0.0
      %196 = vmatpush1.msra.mxu0 %v164
      %197 = vmatprep.subr.mxu0 0.0
      %198 = vmatpush1.msra.mxu0 %v165
      %199 = vmatprep.subr.mxu0 0.0
      %200 = vmatpush1.msra.mxu0 %v166
      %201 = vmatprep.subr.mxu0 0.0
      %202 = vmatpush1.msra.mxu0 %v167
      %203 = vmatprep.subr.mxu0 0.0
      %204 = vmatpush1.msra.mxu0 %v168
      %205 = vmatprep.subr.mxu0 0.0
      %206 = vmatpush1.msra.mxu0 %v169
      %207 = vmatprep.subr.mxu0 0.0
      %208 = vmatpush1.msra.mxu0 %v170
      %209 = vmatprep.subr.mxu0 0.0
      %210 = vmatpush1.msra.mxu0 %v171
      %211 = vmatprep.subr.mxu0 0.0
      %212 = vmatpush1.msra.mxu0 0.0
      %213 = vmatprep.subr.mxu0 0.0
      %214 = vmatpush1.msra.mxu0 0.0
      %215 = vmatprep.subr.mxu0 0.0
      %216 = vmatpush1.msra.mxu0 0.0
      %217 = vmatprep.subr.mxu0 0.0
      %218 = vmatpush1.msra.mxu0 0.0
      %219 = vmatprep.subr.mxu0 0.0
      %220 = vmatpush1.msra.mxu0 0.0
      %221 = vmatprep.subr.mxu0 0.0
      %222 = vmatpush1.msra.mxu0 0.0
      %223 = vmatprep.subr.mxu0 0.0
      %224 = vmatpush1.msra.mxu0 0.0
      %225 = vmatprep.subr.mxu0 0.0
      %226 = vmatpush1.msra.mxu0 0.0
      %227 = vmatprep.subr.mxu0 0.0
      %228 = vmatpush1.msra.mxu0 0.0
      %229 = vmatprep.subr.mxu0 0.0
      %230 = vmatpush1.msra.mxu0 0.0
      %231 = vmatprep.subr.mxu0 0.0
      %232 = vmatpush1.msra.mxu0 0.0
      %233 = vmatprep.subr.mxu0 0.0
      %234 = vmatpush1.msra.mxu0 0.0
      %235 = vmatprep.subr.mxu0 0.0
      %236 = vmatpush1.msra.mxu0 0.0
      %237 = vmatprep.subr.mxu0 0.0
      %238 = vmatpush1.msra.mxu0 0.0
      %239 = vmatprep.subr.mxu0 0.0
      %240 = vmatpush1.msra.mxu0 0.0
      %241 = vmatprep.subr.mxu0 0.0
      %242 = vmatpush1.msra.mxu0 0.0
      %243 = vmatprep.mubr.f32.mxu0 0.0
      %244 = vmatmul.mubr.f32.gmra.mrb[0].mxu0 %v154
      %v245 = vpop.f32.mrb[0].mxu0
      %v246 = vadd.f32 %v177, %v245
      %v247 = vpop.f32.mrb[0].mxu0
      %248 = vmatprep.mubr.f32.mxu0 0.0
      %249 = vmatmul.mubr.f32.gmra.mrb[0].mxu0 %v155
      %v250 = vpop.f32.mrb[0].mxu0
      %v251 = vadd.f32 %v177, %v250
      %v252 = vpop.f32.mrb[0].mxu0
      %253 = vdwg.mxu0
      %v254 = vld [vmem:[%s2] sm:$0xff]
      %v255 = vld [vmem:[%s2 + $0x8] sm:$0xff]
      %vm256 = vcmp.ne.f32.partialorder %v254, 0.0
      %vm257 = vcmp.ne.f32.partialorder %v255, 0.0
      %v258 = vsel %vm256, 1, 0
      %v259 = vsel %vm257, 1, 0
      %260 = vset.pattern.permute.xlu0 0
      %261 = vperm.xlu0 %260, %v258
      %v262 = vpop.permute.xlu0 %261
      %263 = vset.pattern.permute.xlu0 0
      %264 = vperm.xlu0 %263, %v259
      %v265 = vpop.permute.xlu0 %264
      %vm266 = vcmp.eq.s32.totalorder %v262, 1
      %vm267 = vcmp.eq.s32.totalorder %v265, 1
      %v268 = vsel %vm266, %v246, 0.0
      %v269 = vsel %vm267, %v251, 0.0
      %270 = vst [vmem:[#allocation9] sm:$0xff] %v268
      %271 = vst [vmem:[#allocation9 + $0x8] sm:$0xff] %v269
    $region37: #{tpu_custom_call.1} parent=1 // pred_fallthru
      _
    %p272 = scmp.eq.s32.totalorder %s54, 0
    // Predicated region
    $region38: #{tpu_custom_call.1} parent=1 // pred_check
      %p273 = pneg %p272
    $region39: #{tpu_custom_call.1} parent=1 // pred_check_branch
      %275 = sbr.rel (%p273) target = $region41
    $region40: #{tpu_custom_call.1} parent=1 // pred_region
      %276 = vst [vmem:[#allocation9] sm:$0xff] 0.0
      %277 = vst [vmem:[#allocation9 + $0x8] sm:$0xff] 0.0
    $region41: #{tpu_custom_call.1} parent=1 // pred_fallthru
      _
    // Predicated region
    $region42: #{tpu_custom_call.1} parent=1 // pred_check
      _
    $region43: #{tpu_custom_call.1} parent=1 // pred_check_branch
      %279 = sbr.rel (0) target = $region45
    $region44: #{tpu_custom_call.1} parent=1 // pred_region
      %s281 = ssub.s32 256, 256
      %282 = vsyncadd [#allocation6], %s281
      %s283 = sshll.u32 [#allocation9], 4
      %s284 = int_to_ptr.vmem [resolvable:$true] %s283
      %289 = dma.vmem_to_hbm [thread:$0]  %s284, 256, %s7, [#allocation6], 128, 128, 8
    $region45: #{tpu_custom_call.1} parent=1 // pred_fallthru
      _
    // Predicated region
    $region46: #{tpu_custom_call.1} parent=1 // pred_check
      _
    $region47: #{tpu_custom_call.1} parent=1 // pred_check_branch
      %291 = sbr.rel (0) target = $region49
    $region48: #{tpu_custom_call.1} parent=1 // pred_region
      %292 = dma.done [#allocation6], 256
    $region49: #{tpu_custom_call.1} parent=1 // pred_fallthru
      _
    %293 = vsyncpa [#allocation5], 1
    %294 = vsyncpa [#allocation8], 1
    %295 = vsyncpa [#allocation6], 1

</llo_original>
